<compile_context>
chip_gen: v5e
topology: v5e:2x2
jax: 0.10.0
libtpu: 0.0.40
codegen_flags: <defaults>
</compile_context>

<pallas_src>
import functools

import numpy as np
import jax
import jax.numpy as jnp
from jax import lax
from jax.experimental import pallas as pl
from jax.experimental.pallas import tpu as pltpu


# ---------------------------------------------------------------------------
# Structuring-element tables from the PyTorch module (deterministic).
# ---------------------------------------------------------------------------
_INDICES_LIST = np.array(
    [[2, 0, 0], [2, 0, 1], [2, 0, 2], [1, 0, 2], [0, 0, 2], [0, 0, 1],
     [0, 0, 0], [1, 0, 0], [1, 0, 1], [2, 1, 0], [2, 1, 1], [2, 1, 2],
     [1, 1, 2], [0, 1, 2], [0, 1, 1], [0, 1, 0], [1, 1, 0], [2, 2, 0],
     [2, 2, 1], [2, 2, 2], [1, 2, 2], [0, 2, 2], [0, 2, 1], [0, 2, 0],
     [1, 2, 0], [1, 2, 1], [1, 1, 1]], dtype=np.int64)

_VOX = {
    6:  [8, 10, 12, 25, 16, 14, 26],
    18: [8, 10, 12, 25, 16, 14, 1, 3, 5, 7, 9, 11, 13, 15, 18, 20, 22, 24, 26],
    26: [8, 10, 12, 25, 16, 14, 1, 3, 5, 7, 9, 11, 13, 15, 18, 20, 22, 24,
         0, 2, 4, 6, 17, 19, 21, 23, 26],
}


def _rel_offsets(connectivity):
    """(dz, dy, dx) relative offsets in {-1, 0, +1} of the structuring element."""
    return tuple(tuple(int(v) - 1 for v in _INDICES_LIST[i]) for i in _VOX[connectivity])


def _needed_offsets(conn):
    """Offsets whose OOB masks the kernel needs for this connectivity."""
    if conn == 26:   # separable box path only needs the 6 face directions
        return ((-1, 0, 0), (1, 0, 0), (0, -1, 0), (0, 1, 0), (0, 0, -1), (0, 0, 1))
    return _rel_offsets(conn)


# ---------------------------------------------------------------------------
# In-kernel helpers (operate on traced (D, H*W) values; z on sublanes, y*W+x on lanes).
# ---------------------------------------------------------------------------
def _lane_roll(t, d, HW):
    """Sample t at folded-lane offset +d (wraparound garbage handled by masks)."""
    s = (-d) % HW
    if s == 0:
        return t
    return pltpu.roll(t, s, axis=t.ndim - 1)      # XLU lane rotate


def _sublane_roll(t, d, D):
    """Sample t at depth offset +d (wraparound garbage handled by masks)."""
    s = (-d) % D
    if s == 0:
        return t
    return pltpu.roll(t, s, axis=t.ndim - 2)      # XLU sublane rotate


def _make_combined_masks(offsets, D, H, W, xpos):
    """One combined boolean (D, H*W) mask per offset: True where that neighbour is
    outside the volume. Computed ONCE per kernel invocation (hoisted out of loops).
    `xpos` is a (1, H*W) int32 x-coordinate input, or None when W is a power of two
    (then x = lane & (W-1) is computed with a bitwise AND)."""
    HW = H * W
    shape = (D, HW)
    lane = lax.broadcasted_iota(jnp.int32, shape, 1)   # y * W + x
    zpos = lax.broadcasted_iota(jnp.int32, shape, 0)   # z
    if xpos is None:
        xp = lane & (W - 1)                            # W is a power of two
    else:
        xp = jnp.broadcast_to(xpos, shape)
    base = {
        ("z", -1): zpos == 0,        ("z", 1): zpos == D - 1,
        ("y", -1): lane < W,         ("y", 1): lane >= (H - 1) * W,
        ("x", -1): xp == 0,          ("x", 1): xp == W - 1,
    }
    masks = {}
    for off in offsets:
        rz, ry, rx = off
        m = None
        for ax, d in (("z", rz), ("y", ry), ("x", rx)):
            if d != 0:
                bm = base[(ax, d)]
                m = bm if m is None else jnp.logical_or(m, bm)
        masks[off] = m          # None for the (0,0,0) center tap
    return masks


def _grouped_product(t, offsets, masks, W, D, HW):
    """prod over SE neighbours (OOB factor = 1) with rolls de-duplicated by lane shift
    and a 4-way accumulator tree (VALU ILP, bounded live values)."""
    groups = {}
    for off in offsets:
        rz, ry, rx = off
        groups.setdefault(ry * W + rx, []).append((rz, off))
    accs = [None, None, None, None]
    j = 0
    for ls, items in groups.items():
        base = _lane_roll(t, ls, HW)               # one lane roll per unique shift
        for rz, off in items:
            f = _sublane_roll(base, rz, D)         # z variant from the shared base
            m = masks[off]
            if m is not None:
                f = jnp.where(m, jnp.float32(1.0), f)
            k = j & 3
            accs[k] = f if accs[k] is None else accs[k] * f
            j += 1
    accs = [a for a in accs if a is not None]
    while len(accs) > 1:
        nxt = [accs[i] * accs[i + 1] for i in range(0, len(accs) - 1, 2)]
        if len(accs) % 2:
            nxt.append(accs[-1])
        accs = nxt
    return accs[0]


def _box_product(t, masks, W, D, HW):
    """Full 3x3x3 box product (conn=26) via three separable 3-tap passes."""
    p = t
    for lo_off, hi_off, is_z, step in (
        ((0, 0, -1), (0, 0, 1), False, 1),
        ((0, -1, 0), (0, 1, 0), False, W),
        ((-1, 0, 0), (1, 0, 0), True, 1),
    ):
        if is_z:
            lo, hi = _sublane_roll(p, -1, D), _sublane_roll(p, 1, D)
        else:
            lo, hi = _lane_roll(p, -step, HW), _lane_roll(p, step, HW)
        lo = jnp.where(masks[lo_off], jnp.float32(1.0), lo)
        hi = jnp.where(masks[hi_off], jnp.float32(1.0), hi)
        p = (lo * hi) * p
    return p


def _se_product(t, connectivity, masks, W, D, HW):
    if connectivity == 26:
        return _box_product(t, masks, W, D, HW)
    return _grouped_product(t, _rel_offsets(connectivity), masks, W, D, HW)


# ---------------------------------------------------------------------------
# Fused closing kernel: all dilation + erosion iterations in one pass.
# ---------------------------------------------------------------------------
def _closing_kernel(*refs, D, H, W, iterations, dil_conn, ero_conn, has_xpos):
    if has_xpos:
        xpos_ref, x_ref, o_ref = refs
        xpos = xpos_ref[...]                         # (1, H*W) int32
    else:
        x_ref, o_ref = refs
        xpos = None
    HW = H * W
    x = x_ref[...].astype(jnp.float32)               # (D, H*W)

    needed = sorted(set(_needed_offsets(dil_conn)) | set(_needed_offsets(ero_conn)))
    masks = _make_combined_masks(needed, D, H, W, xpos)   # hoisted, loop-invariant

    # Soft dilation: x <- 1 - prod_SE (1 - x); zero padding => OOB factor is 1.
    def dil_step(v):
        return 1.0 - _se_product(1.0 - v, dil_conn, masks, W, D, HW)

    # Soft erosion: x <- x * prod_SE x; one padding => OOB factor is 1.
    def ero_step(v):
        return v * _se_product(v, ero_conn, masks, W, D, HW)

    if iterations <= 4:          # unroll small trip counts (LLO scheduler visibility)
        for _ in range(iterations):
            x = dil_step(x)
        for _ in range(iterations):
            x = ero_step(x)
    else:                        # visible loop keeps code size / live ranges bounded
        x = lax.fori_loop(0, iterations, lambda _, v: dil_step(v), x)
        x = lax.fori_loop(0, iterations, lambda _, v: ero_step(v), x)

    o_ref[...] = x.astype(o_ref.dtype)


def _vmem_limit_bytes(default=64 * 1024 * 1024):
    """Per-generation scoped-VMEM limit: ~3/4 of capacity (96 MiB v5e/v6e, 48 MiB v7x),
    leaving headroom for double-buffered in/out blocks and compiler scratch."""
    try:
        cap = int(pltpu.get_tpu_info().vmem_capacity_bytes)
    except Exception:
        return default
    return max(32 * 1024 * 1024, (cap * 3) // 4)


# ---------------------------------------------------------------------------
# Wrapper mirroring SoftClosing3D.forward (product / multi-linear t-norm).
# ---------------------------------------------------------------------------
def soft_closing_3d(input_img, iterations=1, dilation_connectivity=6,
                    erosion_connectivity=6, method="product"):
    for conn in (dilation_connectivity, erosion_connectivity):
        if conn not in (6, 18, 26):
            raise ValueError("Connectivity should either be 6, 18 or 26")
    if method not in ("product", "multi-linear"):
        # TODO(synk): t-norm variants ('minmax','drastic','bounded','einstein',
        # 'hamacher') are not implemented in the Pallas path.
        raise NotImplementedError("Only 'product' / 'multi-linear' methods implemented.")

    im = jnp.asarray(input_img)
    if im.ndim == 3:
        im = im[None, None]
    elif im.ndim == 4:
        im = im[None]
    elif im.ndim != 5:
        raise ValueError(f"Invalid input shape {im.shape}")

    B, C, D, H, W = im.shape
    BC, HW = B * C, H * W
    # Lane-dense layout: fold (H, W) onto the lane axis, depth on sublanes.
    x = im.reshape(BC, D, HW)

    w_pow2 = (W & (W - 1)) == 0
    args, in_specs = [], []
    if not w_pow2:
        # x coordinate of each folded lane position (avoids vector int mod in-kernel).
        xpos = jnp.asarray(np.tile(np.arange(W, dtype=np.int32), H)[None, :])
        args.append(xpos)
        in_specs.append(pl.BlockSpec((1, HW), lambda i: (0, 0)))
    args.append(x)
    # bc_chunk fixed to 1 (squeezed): keeps the product tree register-resident and
    # gives every grid block to a TensorCore; per-step overhead is negligible here.
    in_specs.append(pl.BlockSpec((None, D, HW), lambda i: (i, 0, 0)))

    kernel = functools.partial(
        _closing_kernel, D=D, H=H, W=W, iterations=int(iterations),
        dil_conn=int(dilation_connectivity), ero_conn=int(erosion_connectivity),
        has_xpos=not w_pow2)

    out = pl.pallas_call(
        kernel,
        out_shape=jax.ShapeDtypeStruct((BC, D, HW), im.dtype),
        grid=(BC,),
        in_specs=in_specs,
        out_specs=pl.BlockSpec((None, D, HW), lambda i: (i, 0, 0)),
        compiler_params=pltpu.CompilerParams(
            dimension_semantics=("parallel",),
            vmem_limit_bytes=_vmem_limit_bytes(),
        ),
    )(*args)
    return out.reshape(B, C, D, H, W)


# ---------------------------------------------------------------------------
# Pure-JAX reference (direct transcription of the PyTorch math) for checking.
# ---------------------------------------------------------------------------
def _reference_closing(im, iterations, dil_conn, ero_conn):
    def windows(xp, D, H, W, conn):
        for i in _VOX[conn]:
            dz, dy, dx = (int(v) for v in _INDICES_LIST[i])
            yield xp[:, :, dz:dz + D, dy:dy + H, dx:dx + W]

    x = im
    for _ in range(iterations):                      # dilation, zero padding
        D, H, W = x.shape[2:]
        xp = jnp.pad(x, ((0, 0), (0, 0), (1, 1), (1, 1), (1, 1)), constant_values=0.0)
        prod = jnp.ones_like(x)
        for w in windows(xp, D, H, W, dil_conn):
            prod = prod * (1.0 - w)
        x = 1.0 - prod
    for _ in range(iterations):                      # erosion, one padding
        D, H, W = x.shape[2:]
        xp = jnp.pad(x, ((0, 0), (0, 0), (1, 1), (1, 1), (1, 1)), constant_values=1.0)
        prod = jnp.ones_like(x)
        for w in windows(xp, D, H, W, ero_conn):
            prod = prod * w
        x = x * prod
    return x


if __name__ == "__main__":
    key = jax.random.PRNGKey(0)
    # Deterministic input in [0, 1): [batch=2, channels=4, depth=16, height=16, width=16]
    im = jax.random.uniform(key, (2, 4, 16, 16, 16), dtype=jnp.float32)

    # Default closing: iterations=1, connectivity 6/6, method='product'.
    out = jax.block_until_ready(
        soft_closing_3d(im, iterations=1, dilation_connectivity=6,
                        erosion_connectivity=6, method="product"))
    ref = _reference_closing(im, 1, 6, 6)
    assert out.shape == (2, 4, 16, 16, 16)
    assert jnp.allclose(out, ref, atol=1e-5, rtol=1e-5), "mismatch (it=1, conn 6/6)"

    # Multi-iteration fusion + separable conn=26 + roll-deduplicated conn=18 paths.
    out2 = jax.block_until_ready(
        soft_closing_3d(im, iterations=2, dilation_connectivity=26,
                        erosion_connectivity=18, method="product"))
    ref2 = _reference_closing(im, 2, 26, 18)
    assert jnp.allclose(out2, ref2, atol=1e-5, rtol=1e-5), "mismatch (it=2, conn 26/18)"

    # iterations > 4 exercises the lax.fori_loop path (and a different BC/D).
    im3 = jax.random.uniform(jax.random.PRNGKey(1), (1, 2, 8, 16, 16), dtype=jnp.float32)
    out3 = jax.block_until_ready(
        soft_closing_3d(im3, iterations=5, dilation_connectivity=6,
                        erosion_connectivity=6, method="product"))
    ref3 = _reference_closing(im3, 5, 6, 6)
    assert jnp.allclose(out3, ref3, atol=1e-5, rtol=1e-5), "mismatch (it=5, conn 6/6)"

    print("KERNEL_OK")
</pallas_src>

<mosaic_0001>
module attributes {stable_mosaic.version = 11 : i64} {
  func.func @_closing_kernel(%arg0: i32, %arg1: memref<1x16x256xf32, #tpu.memory_space<vmem>>, %arg2: memref<1x16x256xf32, #tpu.memory_space<vmem>>) attributes {dimension_semantics = [#tpu.dimension_semantics<parallel>], iteration_bounds = array<i64: 8>, scalar_prefetch = 0 : i64, scratch_operands = 0 : i64, tpu.core_type = #tpu.core_type<tc>, window_params = [{transform_indices = @transform_0, window_bounds = array<i64: 1, 16, 256>}, {transform_indices = @transform_1, window_bounds = array<i64: 1, 16, 256>}]} {
    %c0 = arith.constant 0 : index
    %c0_0 = arith.constant 0 : index
    %c0_1 = arith.constant 0 : index
    %0 = vector.load %arg1[%c0, %c0_0, %c0_1] : memref<1x16x256xf32, #tpu.memory_space<vmem>>, vector<1x16x256xf32>
    %1 = vector.shape_cast %0 : vector<1x16x256xf32> to vector<16x256xf32>
    %2 = tpu.iota {dimensions = array<i32: 1>} : vector<16x256xi32>
    %3 = tpu.iota {dimensions = array<i32: 0>} : vector<16x256xi32>
    %c15_i32 = arith.constant 15 : i32
    %4 = vector.broadcast %c15_i32 : i32 to vector<16x256xi32>
    %5 = arith.andi %2, %4 : vector<16x256xi32>
    %c0_i32 = arith.constant 0 : i32
    %6 = vector.broadcast %c0_i32 : i32 to vector<16x256xi32>
    %7 = arith.cmpi eq, %3, %6 : vector<16x256xi32>
    %c15_i32_2 = arith.constant 15 : i32
    %8 = vector.broadcast %c15_i32_2 : i32 to vector<16x256xi32>
    %9 = arith.cmpi eq, %3, %8 : vector<16x256xi32>
    %c16_i32 = arith.constant 16 : i32
    %10 = vector.broadcast %c16_i32 : i32 to vector<16x256xi32>
    %11 = arith.cmpi slt, %2, %10 : vector<16x256xi32>
    %c240_i32 = arith.constant 240 : i32
    %12 = vector.broadcast %c240_i32 : i32 to vector<16x256xi32>
    %13 = arith.cmpi sge, %2, %12 : vector<16x256xi32>
    %c0_i32_3 = arith.constant 0 : i32
    %14 = vector.broadcast %c0_i32_3 : i32 to vector<16x256xi32>
    %15 = arith.cmpi eq, %5, %14 : vector<16x256xi32>
    %c15_i32_4 = arith.constant 15 : i32
    %16 = vector.broadcast %c15_i32_4 : i32 to vector<16x256xi32>
    %17 = arith.cmpi eq, %5, %16 : vector<16x256xi32>
    %cst = arith.constant 1.000000e+00 : f32
    %18 = vector.broadcast %cst : f32 to vector<16x256xf32>
    %19 = arith.subf %18, %1 : vector<16x256xf32>
    %c16_i32_5 = arith.constant 16 : i32
    %20 = tpu.dynamic_rotate %19 by %c16_i32_5 dim 1 : vector<16x256xf32>, i32 -> vector<16x256xf32>
    %cst_6 = arith.constant 1.000000e+00 : f32
    %21 = vector.broadcast %cst_6 : f32 to vector<16x256xf32>
    %22 = arith.select %11, %21, %20 : vector<16x256xi1>, vector<16x256xf32>
    %c15_i32_7 = arith.constant 15 : i32
    %23 = tpu.dynamic_rotate %19 by %c15_i32_7 dim 0 : vector<16x256xf32>, i32 -> vector<16x256xf32>
    %cst_8 = arith.constant 1.000000e+00 : f32
    %24 = vector.broadcast %cst_8 : f32 to vector<16x256xf32>
    %25 = arith.select %9, %24, %23 : vector<16x256xi1>, vector<16x256xf32>
    %c1_i32 = arith.constant 1 : i32
    %26 = tpu.dynamic_rotate %19 by %c1_i32 dim 0 : vector<16x256xf32>, i32 -> vector<16x256xf32>
    %cst_9 = arith.constant 1.000000e+00 : f32
    %27 = vector.broadcast %cst_9 : f32 to vector<16x256xf32>
    %28 = arith.select %7, %27, %26 : vector<16x256xi1>, vector<16x256xf32>
    %c255_i32 = arith.constant 255 : i32
    %29 = tpu.dynamic_rotate %19 by %c255_i32 dim 1 : vector<16x256xf32>, i32 -> vector<16x256xf32>
    %cst_10 = arith.constant 1.000000e+00 : f32
    %30 = vector.broadcast %cst_10 : f32 to vector<16x256xf32>
    %31 = arith.select %17, %30, %29 : vector<16x256xi1>, vector<16x256xf32>
    %32 = arith.mulf %22, %31 : vector<16x256xf32>
    %c240_i32_11 = arith.constant 240 : i32
    %33 = tpu.dynamic_rotate %19 by %c240_i32_11 dim 1 : vector<16x256xf32>, i32 -> vector<16x256xf32>
    %cst_12 = arith.constant 1.000000e+00 : f32
    %34 = vector.broadcast %cst_12 : f32 to vector<16x256xf32>
    %35 = arith.select %13, %34, %33 : vector<16x256xi1>, vector<16x256xf32>
    %36 = arith.mulf %25, %35 : vector<16x256xf32>
    %c1_i32_13 = arith.constant 1 : i32
    %37 = tpu.dynamic_rotate %19 by %c1_i32_13 dim 1 : vector<16x256xf32>, i32 -> vector<16x256xf32>
    %cst_14 = arith.constant 1.000000e+00 : f32
    %38 = vector.broadcast %cst_14 : f32 to vector<16x256xf32>
    %39 = arith.select %15, %38, %37 : vector<16x256xi1>, vector<16x256xf32>
    %40 = arith.mulf %28, %39 : vector<16x256xf32>
    %41 = arith.mulf %32, %36 : vector<16x256xf32>
    %42 = arith.mulf %40, %19 : vector<16x256xf32>
    %43 = arith.mulf %41, %42 : vector<16x256xf32>
    %cst_15 = arith.constant 1.000000e+00 : f32
    %44 = vector.broadcast %cst_15 : f32 to vector<16x256xf32>
    %45 = arith.subf %44, %43 : vector<16x256xf32>
    %c16_i32_16 = arith.constant 16 : i32
    %46 = tpu.dynamic_rotate %45 by %c16_i32_16 dim 1 : vector<16x256xf32>, i32 -> vector<16x256xf32>
    %cst_17 = arith.constant 1.000000e+00 : f32
    %47 = vector.broadcast %cst_17 : f32 to vector<16x256xf32>
    %48 = arith.select %11, %47, %46 : vector<16x256xi1>, vector<16x256xf32>
    %c15_i32_18 = arith.constant 15 : i32
    %49 = tpu.dynamic_rotate %45 by %c15_i32_18 dim 0 : vector<16x256xf32>, i32 -> vector<16x256xf32>
    %cst_19 = arith.constant 1.000000e+00 : f32
    %50 = vector.broadcast %cst_19 : f32 to vector<16x256xf32>
    %51 = arith.select %9, %50, %49 : vector<16x256xi1>, vector<16x256xf32>
    %c1_i32_20 = arith.constant 1 : i32
    %52 = tpu.dynamic_rotate %45 by %c1_i32_20 dim 0 : vector<16x256xf32>, i32 -> vector<16x256xf32>
    %cst_21 = arith.constant 1.000000e+00 : f32
    %53 = vector.broadcast %cst_21 : f32 to vector<16x256xf32>
    %54 = arith.select %7, %53, %52 : vector<16x256xi1>, vector<16x256xf32>
    %c255_i32_22 = arith.constant 255 : i32
    %55 = tpu.dynamic_rotate %45 by %c255_i32_22 dim 1 : vector<16x256xf32>, i32 -> vector<16x256xf32>
    %cst_23 = arith.constant 1.000000e+00 : f32
    %56 = vector.broadcast %cst_23 : f32 to vector<16x256xf32>
    %57 = arith.select %17, %56, %55 : vector<16x256xi1>, vector<16x256xf32>
    %58 = arith.mulf %48, %57 : vector<16x256xf32>
    %c240_i32_24 = arith.constant 240 : i32
    %59 = tpu.dynamic_rotate %45 by %c240_i32_24 dim 1 : vector<16x256xf32>, i32 -> vector<16x256xf32>
    %cst_25 = arith.constant 1.000000e+00 : f32
    %60 = vector.broadcast %cst_25 : f32 to vector<16x256xf32>
    %61 = arith.select %13, %60, %59 : vector<16x256xi1>, vector<16x256xf32>
    %62 = arith.mulf %51, %61 : vector<16x256xf32>
    %c1_i32_26 = arith.constant 1 : i32
    %63 = tpu.dynamic_rotate %45 by %c1_i32_26 dim 1 : vector<16x256xf32>, i32 -> vector<16x256xf32>
    %cst_27 = arith.constant 1.000000e+00 : f32
    %64 = vector.broadcast %cst_27 : f32 to vector<16x256xf32>
    %65 = arith.select %15, %64, %63 : vector<16x256xi1>, vector<16x256xf32>
    %66 = arith.mulf %54, %65 : vector<16x256xf32>
    %67 = arith.mulf %58, %62 : vector<16x256xf32>
    %68 = arith.mulf %66, %45 : vector<16x256xf32>
    %69 = arith.mulf %67, %68 : vector<16x256xf32>
    %70 = arith.mulf %45, %69 : vector<16x256xf32>
    %c0_28 = arith.constant 0 : index
    %c0_29 = arith.constant 0 : index
    %c0_30 = arith.constant 0 : index
    %71 = vector.load %arg2[%c0_28, %c0_29, %c0_30] : memref<1x16x256xf32, #tpu.memory_space<vmem>>, vector<1x16x256xf32>
    %72 = vector.shape_cast %71 : vector<1x16x256xf32> to vector<16x256xf32>
    %73 = vector.shape_cast %70 : vector<16x256xf32> to vector<1x16x256xf32>
    tpu.vector_store %arg2[%c0_28, %c0_29, %c0_30], %73 {strides = array<i32>} : memref<1x16x256xf32, #tpu.memory_space<vmem>>, vector<1x16x256xf32>,
    return
  }
  func.func @transform_0(%arg0: i32) -> (i32, i32, i32) {
    %c0_i32 = arith.constant 0 : i32
    %c0_i32_0 = arith.constant 0 : i32
    %c0_i32_1 = arith.constant 0 : i32
    return %arg0, %c0_i32, %c0_i32_0 : i32, i32, i32
  }
  func.func @transform_1(%arg0: i32) -> (i32, i32, i32) {
    %c0_i32 = arith.constant 0 : i32
    %c0_i32_0 = arith.constant 0 : i32
    %c0_i32_1 = arith.constant 0 : i32
    return %arg0, %c0_i32, %c0_i32_0 : i32, i32, i32
  }
}

</mosaic_0001>

<llo_original>
// kernel: tpu_custom_call.1
$region0: #{tpu_custom_call.1}
  #allocation0 [shape = 'u32[]', space=smem, size = 0x4, offset = 0x4, fixed_abs, tag = 'smem constant byte address 0x4 - core index']
  #allocation1 [shape = 'u32[72,128]{1,0:T(1,128)}', space=vmem, size = 0x9000, scoped, tag = 'internal scratch']
  %s0 = inlined_call_operand.hbm [shape: f32[8,16,256], index: 0, kind: input, shape index: {}]
  %s1 = inlined_call_operand.hbm [shape: f32[8,16,256], index: 1, kind: output, shape index: {}]
  %s2 = sld [smem:[#allocation0]]
  $region41: #{tpu_custom_call.1} parent=0
    _
  %s4 = ssub.s32 1, %s2
  %s5 = scalar_select 0, %s4, %s2
  $region1: #{tpu_custom_call.1} parent=0
    #allocation2 [shape = 'u8[32768]{0}', space=vmem, size = 0x8000, scoped, tag = 'input window, operand 0']
    #allocation3 [shape = 's32[2]{0}', space=sflag, size = 0x8, scoped, tag = 'scoped memory for tpu_custom_call.1']
    #allocation4 [shape = 's32[2]{0}', space=sflag, size = 0x8, scoped, tag = 'scoped memory for tpu_custom_call.1']
    #allocation5 [shape = 'u8[32768]{0}', space=vmem, size = 0x8000, scoped, tag = 'output window, operand 0']
    %6 = vsyncpa [#allocation3], 0
    %s7 = scalar_lea.sflag [#allocation3], 1
    %8 = vsyncpa %s7, 0
    %9 = vsyncpa [#allocation4], 0
    %s10 = scalar_lea.sflag [#allocation4], 1
    %11 = vsyncpa %s10, 0
    loop: start=0, step=1, limit=10
    $region2: #{tpu_custom_call.1} parent=1 // loop_pre_header
      _
    $region3: #{tpu_custom_call.1} parent=1 // loop_header
      %s13 = sphi 0, %s17
      %p14 = scmp.ge.s32.totalorder %s13, 10
      %s23 = sphi 0, %s25
      %s26 = sphi 0, %s23
      %s27 = sphi 0, %s26
      %s43 = sphi 0, %s27
      %s49 = sphi 0, %s51
      %s52 = sphi 0, %s49
      %s53 = sphi 0, %s52
      %s69 = sphi 0, %s53
    $region4: #{tpu_custom_call.1} parent=1 // loop_header_branch
      %16 = sbr.rel (%p14) target = $region8
    $region5: #{tpu_custom_call.1} parent=1 // loop_body
      %s18 = ssub.s32 %s13, 1
      %s19 = ssub.s32 %s13, 2
      %s20 = sadd.s32 %s13, 1
      %s21 = ssub.s32 %s13, %s20
      %p22 = scmp.eq.s32.totalorder %s21, 0
      %s24 = sadd.s32 %s23, 1
      %s25 = scalar_select %p22, %s23, %s24
      %p28 = pneg %p22
      %p29 = scmp.eq.s32.totalorder %s13, 7
      %p30 = por %p28, %p29
      %p31 = scmp.ne.s32.totalorder %s23, %s26
      %p32 = scmp.eq.s32.totalorder %s13, 0
      %p33 = por %p31, %p32
      %p34 = scmp.ne.s32.totalorder %s23, %s26
      %p35 = scmp.eq.s32.totalorder %s18, 7
      %p36 = por %p34, %p35
      %p37 = scmp.ne.s32.totalorder %s26, %s27
      %p38 = scmp.eq.s32.totalorder %s18, 0
      %p39 = por %p37, %p38
      %p40 = scmp.ne.s32.totalorder %s26, %s27
      %p41 = scmp.eq.s32.totalorder %s19, 7
      %p42 = por %p40, %p41
      %p44 = scmp.ne.s32.totalorder %s27, %s43
      %p45 = scmp.eq.s32.totalorder %s19, 0
      %p46 = por %p44, %p45
      %s47 = ssub.s32 %s13, %s20
      %p48 = scmp.eq.s32.totalorder %s47, 0
      %s50 = sadd.s32 %s49, 1
      %s51 = scalar_select %p48, %s49, %s50
      %p54 = pneg %p48
      %p55 = scmp.eq.s32.totalorder %s13, 7
      %p56 = por %p54, %p55
      %p57 = scmp.ne.s32.totalorder %s49, %s52
      %p58 = scmp.eq.s32.totalorder %s13, 0
      %p59 = por %p57, %p58
      %p60 = scmp.ne.s32.totalorder %s49, %s52
      %p61 = scmp.eq.s32.totalorder %s18, 7
      %p62 = por %p60, %p61
      %p63 = scmp.ne.s32.totalorder %s52, %s53
      %p64 = scmp.eq.s32.totalorder %s18, 0
      %p65 = por %p63, %p64
      %p66 = scmp.ne.s32.totalorder %s52, %s53
      %p67 = scmp.eq.s32.totalorder %s19, 7
      %p68 = por %p66, %p67
      %p70 = scmp.ne.s32.totalorder %s53, %s69
      %p71 = scmp.eq.s32.totalorder %s19, 0
      %p72 = por %p70, %p71
      %p73 = scmp.le.s32.totalorder 1, %s13
      %p74 = scmp.lt.s32.totalorder %s13, 9
      %p75 = pnand %p73, %p74
      %p76 = pneg %p75
      // Predicated region
      $region9: #{tpu_custom_call.1} parent=5 // pred_check
        _
      $region10: #{tpu_custom_call.1} parent=5 // pred_check_branch
        %78 = sbr.rel (%p75) target = $region12
      $region11: #{tpu_custom_call.1} parent=5 // pred_region
        %s79 = ssub.s32 %s13, 1
      $region12: #{tpu_custom_call.1} parent=5 // pred_fallthru
        _
      %p80 = scmp.lt.s32.totalorder %s13, 8
      // Predicated region
      $region13: #{tpu_custom_call.1} parent=5 // pred_check
        %p81 = pneg %p80
      $region14: #{tpu_custom_call.1} parent=5 // pred_check_branch
        %83 = sbr.rel (%p81) target = $region16
      $region15: #{tpu_custom_call.1} parent=5 // pred_region
        // Predicated region
        $region17: #{tpu_custom_call.1} parent=15 // pred_check
          %p84 = pneg %p33
        $region18: #{tpu_custom_call.1} parent=15 // pred_check_branch
          %86 = sbr.rel (%p84) target = $region20
        $region19: #{tpu_custom_call.1} parent=15 // pred_region
          %s87 = sand.u32 %s23, 1
          %s88 = scalar_lea.sflag [#allocation3], %s87
          %s89 = sand.u32 %s23, 1
          %s90 = smul.addr %s89, 32
          %s91 = scalar_lea.vmem [#allocation2], %s90
          %93 = vsyncadd %s88, 0
          %s94 = smul.addr %s13, 4
          %s95 = smul.addr %s94, 8
          %s96 = scalar_lea.hbm %s0, %s95
          %s97 = sshll.u32 %s96, 4
          %s98 = int_to_ptr.hbm [resolvable:$true] %s97
          %s99 = sshll.u32 %s91, 4
          %s100 = int_to_ptr.vmem [resolvable:$true] %s99
          %105 = dma.hbm_to_vmem [thread:$0]  %s98, 512, %s100, %s88, 256, 256, 16
        $region20: #{tpu_custom_call.1} parent=15 // pred_fallthru
          _
      $region16: #{tpu_custom_call.1} parent=5 // pred_fallthru
        _
      %p106 = scmp.le.s32.totalorder 1, %s13
      %p107 = scmp.lt.s32.totalorder %s13, 9
      %p108 = pnand %p106, %p107
      %p109 = pneg %p108
      // Predicated region
      $region21: #{tpu_custom_call.1} parent=5 // pred_check
        _
      $region22: #{tpu_custom_call.1} parent=5 // pred_check_branch
        %111 = sbr.rel (%p108) target = $region24
      $region23: #{tpu_custom_call.1} parent=5 // pred_region
        %s112 = ssub.s32 %s13, 1
        %s113 = sand.u32 %s26, 1
        %s114 = scalar_lea.sflag [#allocation3], %s113
        %s115 = sand.u32 %s26, 1
        %s116 = smul.addr %s115, 32
        %s117 = scalar_lea.vmem [#allocation2], %s116
        // Predicated region
        $region25: #{tpu_custom_call.1} parent=23 // pred_check
          %p118 = pneg %p39
        $region26: #{tpu_custom_call.1} parent=23 // pred_check_branch
          %120 = sbr.rel (%p118) target = $region28
        $region27: #{tpu_custom_call.1} parent=23 // pred_region
          %122 = dma.done %s114, 512
        $region28: #{tpu_custom_call.1} parent=23 // pred_fallthru
          _
        %s123 = sand.u32 %s26, 1
        %s124 = scalar_lea.sflag [#allocation3], %s123
        %s125 = sand.u32 %s26, 1
        %s126 = smul.addr %s125, 32
        %s127 = scalar_lea.vmem [#allocation2], %s126
        %p128 = pneg %p39
        %p129 = pneg %p36
        %p130 = pneg %p65
        %p131 = pneg %p62
        %s132 = sand.u32 %s52, 1
        %s133 = scalar_lea.sflag [#allocation4], %s132
        %s134 = sand.u32 %s52, 1
        %s135 = smul.addr %s134, 32
        %s136 = scalar_lea.vmem [#allocation5], %s135
        %v137 = vld [vmem:[%s117] sm:$0xff]
        %v138 = vld [vmem:[%s117 + $0x8] sm:$0xff]
        %v139 = vld [vmem:[%s117 + $0x10] sm:$0xff]
        %v140 = vld [vmem:[%s117 + $0x18] sm:$0xff]
        %v141 = vlaneseq
        %v142 = vand.u32 %v141, 127
        %v143 = vadd.s32 %v142, 128
        %v144 = vlaneseq
        %v145 = vshrl.u32 %v144, 7
        %v146 = vadd.s32 %v145, 8
        %v147 = vand.u32 %v142, 15
        %v148 = vand.u32 %v143, 15
        %vm149 = vcmp.eq.s32.totalorder %v145, 0
        %vm150 = vcmp.eq.s32.totalorder %v146, 0
        %vm151 = vcmp.eq.s32.totalorder %v145, 15
        %vm152 = vcmp.eq.s32.totalorder %v146, 15
        %vm153 = vcmp.lt.s32.totalorder %v142, 16
        %vm154 = vcmp.lt.s32.totalorder %v143, 16
        %vm155 = vcmp.ge.s32.totalorder %v142, 240
        %vm156 = vcmp.ge.s32.totalorder %v143, 240
        %vm157 = vcmp.eq.s32.totalorder %v147, 0
        %vm158 = vcmp.eq.s32.totalorder %v148, 0
        %vm159 = vcmp.eq.s32.totalorder %v147, 15
        %vm160 = vcmp.eq.s32.totalorder %v148, 15
        %v161 = vsub.f32 1.0, %v137
        %v162 = vsub.f32 1.0, %v138
        %v163 = vsub.f32 1.0, %v139
        %v164 = vsub.f32 1.0, %v140
        %165 = vrot.lane.b32.xlu0 %v161, 16
        %v166 = vpop.permute.xlu0 %165
        %167 = vrot.lane.b32.xlu0 %v163, 16
        %v168 = vpop.permute.xlu0 %167
        %169 = vrot.lane.b32.xlu0 %v162, 16
        %v170 = vpop.permute.xlu0 %169
        %171 = vrot.lane.b32.xlu0 %v164, 16
        %v172 = vpop.permute.xlu0 %171
        %v173 = vsel %vm153, %v166, %v170
        %v174 = vsel %vm153, %v168, %v172
        %v175 = vsel %vm153, %v170, %v166
        %v176 = vsel %vm153, %v172, %v168
        %v177 = vsel %vm153, 1.0, %v175
        %v178 = vsel %vm154, 1.0, %v173
        %v179 = vsel %vm153, 1.0, %v176
        %v180 = vsel %vm154, 1.0, %v174
        %v181 = vrot.slane %v161, 1
        %v182 = vrot.slane %v162, 1
        %v183 = vrot.slane %v163, 1
        %v184 = vrot.slane %v164, 1
        %vm185 = vcmp.lt.s32.totalorder %v145, 7
        %v186 = vsel %vm185, %v181, %v183
        %v187 = vsel %vm185, %v182, %v184
        %v188 = vsel %vm185, %v183, %v181
        %v189 = vsel %vm185, %v184, %v182
        %v190 = vsel %vm151, 1.0, %v186
        %v191 = vsel %vm151, 1.0, %v187
        %v192 = vsel %vm152, 1.0, %v188
        %v193 = vsel %vm152, 1.0, %v189
        %v194 = vrot.slane %v161, 7
        %v195 = vrot.slane %v162, 7
        %v196 = vrot.slane %v163, 7
        %v197 = vrot.slane %v164, 7
        %vm198 = vcmp.lt.s32.totalorder %v145, 1
        %v199 = vsel %vm198, %v194, %v196
        %v200 = vsel %vm198, %v195, %v197
        %v201 = vsel %vm198, %v196, %v194
        %v202 = vsel %vm198, %v197, %v195
        %v203 = vsel %vm149, 1.0, %v201
        %v204 = vsel %vm149, 1.0, %v202
        %v205 = vsel %vm150, 1.0, %v199
        %v206 = vsel %vm150, 1.0, %v200
        %207 = vrot.lane.b32.xlu0 %v161, 127
        %v208 = vpop.permute.xlu0 %207
        %209 = vrot.lane.b32.xlu0 %v163, 127
        %v210 = vpop.permute.xlu0 %209
        %211 = vrot.lane.b32.xlu0 %v162, 127
        %v212 = vpop.permute.xlu0 %211
        %213 = vrot.lane.b32.xlu0 %v164, 127
        %v214 = vpop.permute.xlu0 %213
        %vm215 = vcmp.lt.s32.totalorder %v142, 127
        %v216 = vsel %vm215, %v208, %v212
        %v217 = vsel %vm215, %v210, %v214
        %v218 = vsel %vm215, %v212, %v208
        %v219 = vsel %vm215, %v214, %v210
        %v220 = vsel %vm159, 1.0, %v216
        %v221 = vsel %vm160, 1.0, %v218
        %v222 = vsel %vm159, 1.0, %v217
        %v223 = vsel %vm160, 1.0, %v219
        %v224 = vmul.f32 %v177, %v220
        %v225 = vmul.f32 %v178, %v221
        %v226 = vmul.f32 %v179, %v222
        %v227 = vmul.f32 %v180, %v223
        %228 = vrot.lane.b32.xlu0 %v161, 112
        %v229 = vpop.permute.xlu0 %228
        %230 = vrot.lane.b32.xlu0 %v163, 112
        %v231 = vpop.permute.xlu0 %230
        %232 = vrot.lane.b32.xlu0 %v162, 112
        %v233 = vpop.permute.xlu0 %232
        %234 = vrot.lane.b32.xlu0 %v164, 112
        %v235 = vpop.permute.xlu0 %234
        %vm236 = vcmp.lt.s32.totalorder %v142, 112
        %v237 = vsel %vm236, %v229, %v233
        %v238 = vsel %vm236, %v231, %v235
        %v239 = vsel %vm236, %v233, %v229
        %v240 = vsel %vm236, %v235, %v231
        %v241 = vsel %vm155, 1.0, %v237
        %v242 = vsel %vm156, 1.0, %v239
        %v243 = vsel %vm155, 1.0, %v238
        %v244 = vsel %vm156, 1.0, %v240
        %v245 = vmul.f32 %v190, %v241
        %v246 = vmul.f32 %v191, %v242
        %v247 = vmul.f32 %v192, %v243
        %v248 = vmul.f32 %v193, %v244
        %249 = vrot.lane.b32.xlu0 %v161, 1
        %v250 = vpop.permute.xlu0 %249
        %251 = vrot.lane.b32.xlu0 %v163, 1
        %v252 = vpop.permute.xlu0 %251
        %253 = vrot.lane.b32.xlu0 %v162, 1
        %v254 = vpop.permute.xlu0 %253
        %255 = vrot.lane.b32.xlu0 %v164, 1
        %v256 = vpop.permute.xlu0 %255
        %vm257 = vcmp.lt.s32.totalorder %v142, 1
        %v258 = vsel %vm257, %v250, %v254
        %v259 = vsel %vm257, %v252, %v256
        %v260 = vsel %vm257, %v254, %v250
        %v261 = vsel %vm257, %v256, %v252
        %v262 = vsel %vm157, 1.0, %v260
        %v263 = vsel %vm158, 1.0, %v258
        %v264 = vsel %vm157, 1.0, %v261
        %v265 = vsel %vm158, 1.0, %v259
        %v266 = vmul.f32 %v203, %v262
        %v267 = vmul.f32 %v204, %v263
        %v268 = vmul.f32 %v205, %v264
        %v269 = vmul.f32 %v206, %v265
        %v270 = vmul.f32 %v224, %v245
        %v271 = vmul.f32 %v225, %v246
        %v272 = vmul.f32 %v226, %v247
        %v273 = vmul.f32 %v227, %v248
        %v274 = vmul.f32 %v266, %v161
        %v275 = vmul.f32 %v267, %v162
        %v276 = vmul.f32 %v268, %v163
        %v277 = vmul.f32 %v269, %v164
        %v278 = vmul.f32 %v270, %v274
        %v279 = vmul.f32 %v271, %v275
        %v280 = vmul.f32 %v272, %v276
        %v281 = vmul.f32 %v273, %v277
        %v282 = vsub.f32 1.0, %v278
        %v283 = vsub.f32 1.0, %v279
        %v284 = vsub.f32 1.0, %v280
        %v285 = vsub.f32 1.0, %v281
        %286 = vrot.lane.b32.xlu0 %v282, 16
        %v287 = vpop.permute.xlu0 %286
        %288 = vrot.lane.b32.xlu0 %v284, 16
        %v289 = vpop.permute.xlu0 %288
        %290 = vrot.lane.b32.xlu0 %v283, 16
        %v291 = vpop.permute.xlu0 %290
        %292 = vrot.lane.b32.xlu0 %v285, 16
        %v293 = vpop.permute.xlu0 %292
        %v294 = vsel %vm153, %v287, %v291
        %v295 = vsel %vm153, %v289, %v293
        %v296 = vsel %vm153, %v291, %v287
        %v297 = vsel %vm153, %v293, %v289
        %v298 = vsel %vm153, 1.0, %v296
        %v299 = vsel %vm154, 1.0, %v294
        %v300 = vsel %vm153, 1.0, %v297
        %v301 = vsel %vm154, 1.0, %v295
        %v302 = vrot.slane %v282, 1
        %v303 = vrot.slane %v283, 1
        %v304 = vrot.slane %v284, 1
        %v305 = vrot.slane %v285, 1
        %v306 = vsel %vm185, %v302, %v304
        %v307 = vsel %vm185, %v303, %v305
        %v308 = vsel %vm185, %v304, %v302
        %v309 = vsel %vm185, %v305, %v303
        %v310 = vsel %vm151, 1.0, %v306
        %v311 = vsel %vm151, 1.0, %v307
        %v312 = vsel %vm152, 1.0, %v308
        %v313 = vsel %vm152, 1.0, %v309
        %v314 = vrot.slane %v282, 7
        %v315 = vrot.slane %v283, 7
        %v316 = vrot.slane %v284, 7
        %v317 = vrot.slane %v285, 7
        %v318 = vsel %vm198, %v314, %v316
        %v319 = vsel %vm198, %v315, %v317
        %v320 = vsel %vm198, %v316, %v314
        %v321 = vsel %vm198, %v317, %v315
        %v322 = vsel %vm149, 1.0, %v320
        %v323 = vsel %vm149, 1.0, %v321
        %v324 = vsel %vm150, 1.0, %v318
        %v325 = vsel %vm150, 1.0, %v319
        %326 = vrot.lane.b32.xlu0 %v282, 127
        %v327 = vpop.permute.xlu0 %326
        %328 = vrot.lane.b32.xlu0 %v284, 127
        %v329 = vpop.permute.xlu0 %328
        %330 = vrot.lane.b32.xlu0 %v283, 127
        %v331 = vpop.permute.xlu0 %330
        %332 = vrot.lane.b32.xlu0 %v285, 127
        %v333 = vpop.permute.xlu0 %332
        %v334 = vsel %vm215, %v327, %v331
        %v335 = vsel %vm215, %v329, %v333
        %v336 = vsel %vm215, %v331, %v327
        %v337 = vsel %vm215, %v333, %v329
        %v338 = vsel %vm159, 1.0, %v334
        %v339 = vsel %vm160, 1.0, %v336
        %v340 = vsel %vm159, 1.0, %v335
        %v341 = vsel %vm160, 1.0, %v337
        %v342 = vmul.f32 %v298, %v338
        %v343 = vmul.f32 %v299, %v339
        %v344 = vmul.f32 %v300, %v340
        %v345 = vmul.f32 %v301, %v341
        %346 = vrot.lane.b32.xlu0 %v282, 112
        %v347 = vpop.permute.xlu0 %346
        %348 = vrot.lane.b32.xlu0 %v284, 112
        %v349 = vpop.permute.xlu0 %348
        %350 = vrot.lane.b32.xlu0 %v283, 112
        %v351 = vpop.permute.xlu0 %350
        %352 = vrot.lane.b32.xlu0 %v285, 112
        %v353 = vpop.permute.xlu0 %352
        %v354 = vsel %vm236, %v347, %v351
        %v355 = vsel %vm236, %v349, %v353
        %v356 = vsel %vm236, %v351, %v347
        %v357 = vsel %vm236, %v353, %v349
        %v358 = vsel %vm155, 1.0, %v354
        %v359 = vsel %vm156, 1.0, %v356
        %v360 = vsel %vm155, 1.0, %v355
        %v361 = vsel %vm156, 1.0, %v357
        %v362 = vmul.f32 %v310, %v358
        %v363 = vmul.f32 %v311, %v359
        %v364 = vmul.f32 %v312, %v360
        %v365 = vmul.f32 %v313, %v361
        %366 = vrot.lane.b32.xlu0 %v282, 1
        %v367 = vpop.permute.xlu0 %366
        %368 = vrot.lane.b32.xlu0 %v284, 1
        %v369 = vpop.permute.xlu0 %368
        %370 = vrot.lane.b32.xlu0 %v283, 1
        %v371 = vpop.permute.xlu0 %370
        %372 = vrot.lane.b32.xlu0 %v285, 1
        %v373 = vpop.permute.xlu0 %372
        %v374 = vsel %vm257, %v367, %v371
        %v375 = vsel %vm257, %v369, %v373
        %v376 = vsel %vm257, %v371, %v367
        %v377 = vsel %vm257, %v373, %v369
        %v378 = vsel %vm157, 1.0, %v376
        %v379 = vsel %vm158, 1.0, %v374
        %v380 = vsel %vm157, 1.0, %v377
        %v381 = vsel %vm158, 1.0, %v375
        %v382 = vmul.f32 %v322, %v378
        %v383 = vmul.f32 %v323, %v379
        %v384 = vmul.f32 %v324, %v380
        %v385 = vmul.f32 %v325, %v381
        %v386 = vmul.f32 %v342, %v362
        %v387 = vmul.f32 %v343, %v363
        %v388 = vmul.f32 %v344, %v364
        %v389 = vmul.f32 %v345, %v365
        %v390 = vmul.f32 %v382, %v282
        %v391 = vmul.f32 %v383, %v283
        %v392 = vmul.f32 %v384, %v284
        %v393 = vmul.f32 %v385, %v285
        %v394 = vmul.f32 %v386, %v390
        %v395 = vmul.f32 %v387, %v391
        %v396 = vmul.f32 %v388, %v392
        %v397 = vmul.f32 %v389, %v393
        %v398 = vmul.f32 %v282, %v394
        %v399 = vmul.f32 %v283, %v395
        %v400 = vmul.f32 %v284, %v396
        %v401 = vmul.f32 %v285, %v397
        %402 = vst [vmem:[%s136] sm:$0xff] %v398
        %403 = vst [vmem:[%s136 + $0x8] sm:$0xff] %v399
        %404 = vst [vmem:[%s136 + $0x10] sm:$0xff] %v400
        %405 = vst [vmem:[%s136 + $0x18] sm:$0xff] %v401
        %s406 = sand.u32 %s52, 1
        %s407 = scalar_lea.sflag [#allocation4], %s406
        %s408 = sand.u32 %s52, 1
        %s409 = smul.addr %s408, 32
        %s410 = scalar_lea.vmem [#allocation5], %s409
        // Predicated region
        $region29: #{tpu_custom_call.1} parent=23 // pred_check
          %p411 = pneg %p62
        $region30: #{tpu_custom_call.1} parent=23 // pred_check_branch
          %413 = sbr.rel (%p411) target = $region32
        $region31: #{tpu_custom_call.1} parent=23 // pred_region
          %415 = vsyncadd %s407, 0
          %s416 = smul.addr %s18, 4
          %s417 = smul.addr %s416, 8
          %s418 = scalar_lea.hbm %s1, %s417
          %s419 = sshll.u32 %s410, 4
          %s420 = int_to_ptr.vmem [resolvable:$true] %s419
          %s421 = sshll.u32 %s418, 4
          %s422 = int_to_ptr.hbm [resolvable:$true] %s421
          %427 = dma.vmem_to_hbm [thread:$0]  %s420, 512, %s422, %s407, 256, 256, 16
        $region32: #{tpu_custom_call.1} parent=23 // pred_fallthru
          _
      $region24: #{tpu_custom_call.1} parent=5 // pred_fallthru
        _
      %p428 = scmp.le.s32.totalorder 2, %s13
      // Predicated region
      $region33: #{tpu_custom_call.1} parent=5 // pred_check
        %p429 = pneg %p428
      $region34: #{tpu_custom_call.1} parent=5 // pred_check_branch
        %431 = sbr.rel (%p429) target = $region36
      $region35: #{tpu_custom_call.1} parent=5 // pred_region
        %s432 = ssub.s32 %s13, 2
        // Predicated region
        $region37: #{tpu_custom_call.1} parent=35 // pred_check
          %p433 = pneg %p68
        $region38: #{tpu_custom_call.1} parent=35 // pred_check_branch
          %435 = sbr.rel (%p433) target = $region40
        $region39: #{tpu_custom_call.1} parent=35 // pred_region
          %s436 = sand.u32 %s53, 1
          %s437 = scalar_lea.sflag [#allocation4], %s436
          %s438 = sand.u32 %s53, 1
          %s439 = smul.addr %s438, 32
          %s440 = scalar_lea.vmem [#allocation5], %s439
          %442 = dma.done %s437, 512
        $region40: #{tpu_custom_call.1} parent=35 // pred_fallthru
          _
      $region36: #{tpu_custom_call.1} parent=5 // pred_fallthru
        _
    $region6: #{tpu_custom_call.1} parent=1 // loop_footer
      %s17 = sadd.s32 1, %s13
    $region7: #{tpu_custom_call.1} parent=1 // loop_footer_branch
      %12 = sbr.rel target = $region3
    $region8: #{tpu_custom_call.1} parent=1 // loop_exit
      _
    %443 = vsyncpa [#allocation3], 1
    %s444 = scalar_lea.sflag [#allocation3], 1
    %445 = vsyncpa %s444, 1
    %446 = vsyncpa [#allocation4], 1
    %s447 = scalar_lea.sflag [#allocation4], 1
    %448 = vsyncpa %s447, 1

</llo_original>
